<compile_context>
chip_gen: v5e
topology: v5e:2x2
jax: 0.10.0
libtpu: 0.0.40
codegen_flags: <defaults>
</compile_context>

<pallas_src>
import functools

import jax
import jax.numpy as jnp
import numpy as np
from jax.experimental import pallas as pl
from jax.experimental.pallas import tpu as pltpu

LEAKY_SLOPE = 0.2  # nn.LeakyReLU(0.2)


def _vmem_limit_bytes():
    """Generation-aware scoped-VMEM limit: ~100 MiB on 128 MiB chips (v5e/v6e),
    48 MiB on 64 MiB chips (v7x)."""
    cap = 128 * 1024 * 1024
    try:
        cap = int(getattr(pltpu.get_tpu_info(), "vmem_capacity_bytes", cap))
    except Exception:
        pass
    return (48 if cap <= 64 * 1024 * 1024 else 100) * 1024 * 1024


def _pick_row_tile(n, target, min_tiles=1):
    """Largest multiple-of-16 divisor of n that is <= target and leaves >=
    min_tiles grid steps; falls back to n (full block) if none exists."""
    cap = n // min_tiles if min_tiles > 1 else n
    cap = max(16, min(cap, target))
    best = None
    for t in range(16, n + 1, 16):
        if t > cap:
            break
        if n % t == 0:
            best = t
    return best if best is not None else n


def _project_kernel(*refs, with_skip):
    """Per-row-tile projection (+ skip projection) and per-head attention scores."""
    if with_skip:
        (x_ref, wp_ref, ws_ref, asrc_ref, atgt_ref,
         proj_ref, skip_ref, ssrc_ref, stgt_ref) = refs
    else:
        (x_ref, wp_ref, asrc_ref, atgt_ref,
         proj_ref, ssrc_ref, stgt_ref) = refs
        ws_ref = skip_ref = None

    xb = x_ref[...].astype(jnp.bfloat16)                                # (T, F_in)
    proj = jnp.dot(xb, wp_ref[...], preferred_element_type=jnp.float32)  # (T, NHF)
    projb = proj.astype(jnp.bfloat16)
    proj_ref[...] = projb
    if with_skip:
        # Separate dot (no lane-unaligned split of a fused MXU result).
        skip_ref[...] = jnp.dot(xb, ws_ref[...],
                                preferred_element_type=jnp.float32)      # (T, NHF)
    # Block-diagonal scoring matmuls: all heads at once.
    ssrc_ref[...] = jnp.dot(projb, asrc_ref[...],
                            preferred_element_type=jnp.float32)          # (T, NH)
    stgt_ref[...] = jnp.dot(projb, atgt_ref[...],
                            preferred_element_type=jnp.float32)          # (T, NH)


def _attention_kernel(s_src_ref, s_tgt_ref, mask_ref, proj_ref, skipbias_ref,
                      out_ref, acc_ref, *, num_heads, f_out):
    """Masked softmax attention + aggregation + skip/bias + ELU for one row tile."""
    mask = mask_ref[...].astype(jnp.float32)          # (T, N) additive (0 / -1e9), cast once

    for h in range(num_heads):                        # small static unroll over heads
        s_src_h = s_src_ref[:, h:h + 1]               # (T, 1)
        s_tgt_h = s_tgt_ref[h:h + 1, :]               # (1, N)  pre-transposed, hoisted
        scores = s_src_h + s_tgt_h                    # (T, N)  VPU broadcast-add
        scores = jnp.maximum(scores, LEAKY_SLOPE * scores)   # LeakyReLU: mul+max (2 ops)
        scores = scores + mask
        m = jnp.max(scores, axis=-1, keepdims=True)
        e = jnp.exp(scores - m)                       # unnormalized
        denom = jnp.sum(e, axis=-1, keepdims=True)    # (T, 1)
        # Aggregate FIRST (MXU), normalize the small (T, F_out) result after
        # (softmax is linear in e) — removes one VPU mul per score element.
        agg = jnp.dot(e.astype(jnp.bfloat16), proj_ref[h],      # proj_ref[h]: (N, F_out)
                      preferred_element_type=jnp.float32)       # (T, F_out)
        acc_ref[:, h * f_out:(h + 1) * f_out] = agg * pl.reciprocal(denom, approx=True)

    out = acc_ref[...] + skipbias_ref[...]            # skip connection + folded bias
    out_ref[...] = jnp.where(out > 0, out, jnp.expm1(out))      # ELU(alpha=1)


def gat_layer_imp1_forward(x, connectivity_mask, proj_param, a_src, a_tgt,
                           skip_w, bias, *, row_tile=None):
    """Pallas implementation of GATLayerImp1.forward (concat=True, bias=True,
    add_skip_connection=True, activation=ELU, dropout disabled / eval mode)."""
    NH, F_in, F_out = proj_param.shape
    N = x.shape[0]
    NHF = NH * F_out
    assert connectivity_mask.shape == (N, N)
    identity_skip = (F_out == F_in)
    with_skip = not identity_skip

    vmem_limit = _vmem_limit_bytes()
    small_vmem = vmem_limit <= 48 * 1024 * 1024       # v7x-class chip

    # Kernel 1: fat tiles (per-tile VMEM is tiny; grid-step-overhead dominated).
    row_tile1 = _pick_row_tile(N, target=1024, min_tiles=2 if N >= 2048 else 1)

    # Kernel 2: bound the O(row_tile*N) working set; prefer >=2 tiles (v7x megacore).
    if row_tile is None:
        target2 = 256 if small_vmem else 512
        per_row_bytes = max(N, 128) * 24   # bf16 mask (x2 buf) + f32 mask + f32 temps
        target2 = min(target2, max(16, (vmem_limit // 2) // per_row_bytes))
        row_tile2 = _pick_row_tile(N, target=target2, min_tiles=2)
    else:
        row_tile2 = row_tile
        assert N % row_tile2 == 0
        assert row_tile2 == N or row_tile2 % 16 == 0

    num_tiles1 = N // row_tile1
    num_tiles2 = N // row_tile2

    # ---- trace-time parameter packing (tiny ops on parameters only) ----
    w_proj = jnp.transpose(proj_param, (1, 0, 2)).reshape(F_in, NHF).astype(jnp.bfloat16)
    eye_nh = jnp.eye(NH, dtype=jnp.float32)
    a_src_blk = (a_src.reshape(NH, F_out)[:, :, None] * eye_nh[:, None, :]
                 ).reshape(NHF, NH).astype(jnp.bfloat16)        # block-diagonal
    a_tgt_blk = (a_tgt.reshape(NH, F_out)[:, :, None] * eye_nh[:, None, :]
                 ).reshape(NHF, NH).astype(jnp.bfloat16)
    bias_r = bias.reshape(1, NHF).astype(jnp.float32)
    mask_bf16 = connectivity_mask.astype(jnp.bfloat16)   # halve the O(N^2) HBM stream

    # ---- kernel 1: projection (+ skip) + per-head attention scores ----
    k1_inputs = [x, w_proj]
    k1_in_specs = [pl.BlockSpec((row_tile1, F_in), lambda i: (i, 0)),
                   pl.BlockSpec((F_in, NHF), lambda i: (0, 0))]
    k1_out_shapes = [jax.ShapeDtypeStruct((N, NHF), jnp.bfloat16)]
    k1_out_specs = [pl.BlockSpec((row_tile1, NHF), lambda i: (i, 0))]
    if with_skip:
        w_skip = skip_w.T.astype(jnp.bfloat16)                  # (F_in, NHF)
        k1_inputs.append(w_skip)
        k1_in_specs.append(pl.BlockSpec((F_in, NHF), lambda i: (0, 0)))
        k1_out_shapes.append(jax.ShapeDtypeStruct((N, NHF), jnp.float32))
        k1_out_specs.append(pl.BlockSpec((row_tile1, NHF), lambda i: (i, 0)))
    k1_inputs += [a_src_blk, a_tgt_blk]
    k1_in_specs += [pl.BlockSpec((NHF, NH), lambda i: (0, 0)),
                    pl.BlockSpec((NHF, NH), lambda i: (0, 0))]
    k1_out_shapes += [jax.ShapeDtypeStruct((N, NH), jnp.float32),
                      jax.ShapeDtypeStruct((N, NH), jnp.float32)]
    k1_out_specs += [pl.BlockSpec((row_tile1, NH), lambda i: (i, 0)),
                     pl.BlockSpec((row_tile1, NH), lambda i: (i, 0))]

    k1_results = pl.pallas_call(
        functools.partial(_project_kernel, with_skip=with_skip),
        out_shape=tuple(k1_out_shapes),
        grid_spec=pltpu.PrefetchScalarGridSpec(
            num_scalar_prefetch=0,
            grid=(num_tiles1,),
            in_specs=k1_in_specs,
            out_specs=tuple(k1_out_specs)),
        compiler_params=pltpu.CompilerParams(
            dimension_semantics=("parallel",),
            vmem_limit_bytes=vmem_limit),
    )(*k1_inputs)

    if with_skip:
        proj_all, skip_all, s_src_all, s_tgt_all = k1_results
        skipbias = skip_all + bias_r                            # fold bias at trace time
    else:
        proj_all, s_src_all, s_tgt_all = k1_results
        # TODO(synk): avoid materializing the tiled identity skip in HBM by
        # passing x directly to kernel 2 and broadcast-adding per head.
        skipbias = jnp.tile(x, (1, NH)) + bias_r

    # One-time layout plumbing (small N*NHF / N*NH arrays):
    proj_hm = jnp.transpose(proj_all.reshape(N, NH, F_out), (1, 0, 2))  # (NH, N, F_out)
    s_tgt_t = s_tgt_all.T                                               # (NH, N)

    # ---- kernel 2: masked softmax attention + aggregation + skip/bias/ELU ----
    cost = pl.CostEstimate(
        flops=2 * N * N * NHF + 6 * N * N * NH,
        transcendentals=N * N * NH,
        bytes_accessed=N * N * 2 + N * NHF * (2 + 4 + 4) + N * NH * 8)

    out = pl.pallas_call(
        functools.partial(_attention_kernel, num_heads=NH, f_out=F_out),
        out_shape=jax.ShapeDtypeStruct((N, NHF), jnp.float32),
        grid_spec=pltpu.PrefetchScalarGridSpec(
            num_scalar_prefetch=0,
            grid=(num_tiles2,),
            in_specs=[
                pl.BlockSpec((row_tile2, NH), lambda i: (i, 0)),      # s_src tile
                pl.BlockSpec((NH, N), lambda i: (0, 0)),              # s_tgt^T (resident)
                pl.BlockSpec((row_tile2, N), lambda i: (i, 0)),       # mask tile (bf16)
                pl.BlockSpec((NH, N, F_out), lambda i: (0, 0, 0)),    # proj head-major
                pl.BlockSpec((row_tile2, NHF), lambda i: (i, 0)),     # skip + bias tile
            ],
            out_specs=pl.BlockSpec((row_tile2, NHF), lambda i: (i, 0)),
            scratch_shapes=[pltpu.VMEM((row_tile2, NHF), jnp.float32)]),
        compiler_params=pltpu.CompilerParams(
            dimension_semantics=("parallel",),
            vmem_limit_bytes=vmem_limit),
        cost_estimate=cost,
    )(s_src_all, s_tgt_t, mask_bf16, proj_hm, skipbias)

    return out, connectivity_mask


def ref_forward(x, mask, proj_param, a_src, a_tgt, skip_w, bias):
    """Pure-JAX f32 reference mirroring the PyTorch forward (dropout=identity)."""
    NH, F_in, F_out = proj_param.shape
    proj = jnp.einsum('nf,hfo->hno', x, proj_param)               # (NH, N, F_out)
    s_src = jnp.matmul(proj, a_src)                               # (NH, N, 1)
    s_tgt = jnp.matmul(proj, a_tgt)                               # (NH, N, 1)
    scores = s_src + jnp.transpose(s_tgt, (0, 2, 1))              # (NH, N, N)
    scores = jnp.where(scores > 0, scores, LEAKY_SLOPE * scores)
    attn = jax.nn.softmax(scores + mask, axis=-1)
    out = jnp.matmul(attn, proj)                                  # (NH, N, F_out)
    out = jnp.transpose(out, (1, 0, 2))                           # (N, NH, F_out)
    if F_out == F_in:
        out = out + x[:, None, :]
    else:
        out = out + (x @ skip_w.T).reshape(-1, NH, F_out)
    out = out.reshape(-1, NH * F_out) + bias
    return jnp.where(out > 0, out, jnp.expm1(out))


def _xavier_uniform(key, shape, fan_in, fan_out):
    bound = float(np.sqrt(6.0 / (fan_in + fan_out)))
    return jax.random.uniform(key, shape, jnp.float32, -bound, bound)


if __name__ == "__main__":
    # Small shapes consistent with the module's forward (2 row tiles of 64).
    N, F_in, F_out, NH = 128, 32, 16, 4

    key = jax.random.PRNGKey(0)
    k_x, k_adj, k_w, k_as, k_at, k_skip = jax.random.split(key, 6)

    # inputs
    x = jax.random.normal(k_x, (N, F_in), jnp.float32)
    adj = jax.random.bernoulli(k_adj, 0.3, (N, N))
    adj = jnp.logical_or(adj, jnp.eye(N, dtype=bool))            # self loops
    mask = jnp.where(adj, 0.0, -1e9).astype(jnp.float32)         # additive mask

    # parameters (deterministic xavier-uniform-style init; bias zero as in torch)
    proj_param = _xavier_uniform(k_w, (NH, F_in, F_out), F_in * F_out, NH * F_out)
    a_src = _xavier_uniform(k_as, (NH, F_out, 1), F_out, NH)      # scoring_fn_source
    a_tgt = _xavier_uniform(k_at, (NH, F_out, 1), F_out, NH)      # scoring_fn_target
    skip_w = _xavier_uniform(k_skip, (NH * F_out, F_in), F_in, NH * F_out)
    bias = jnp.zeros((NH * F_out,), jnp.float32)

    out, mask_out = gat_layer_imp1_forward(x, mask, proj_param, a_src, a_tgt,
                                           skip_w, bias, row_tile=64)
    out = jax.block_until_ready(out)

    ref = ref_forward(x, mask, proj_param, a_src, a_tgt, skip_w, bias)
    assert out.shape == (N, NH * F_out)
    # Tolerance relaxed vs. the f32 reference because the kernel feeds the MXU
    # bf16 operands (f32 accumulation) and uses the EUP approx reciprocal.
    np.testing.assert_allclose(np.asarray(out), np.asarray(ref),
                               rtol=1e-2, atol=1e-2)
    print("KERNEL_OK")
</pallas_src>

<mosaic_0001>
module attributes {stable_mosaic.version = 11 : i64} {
  func.func @_project_kernel(%arg0: i32, %arg1: memref<128x32xf32, #tpu.memory_space<vmem>>, %arg2: memref<32x64xbf16, #tpu.memory_space<vmem>>, %arg3: memref<32x64xbf16, #tpu.memory_space<vmem>>, %arg4: memref<64x4xbf16, #tpu.memory_space<vmem>>, %arg5: memref<64x4xbf16, #tpu.memory_space<vmem>>, %arg6: memref<128x64xbf16, #tpu.memory_space<vmem>>, %arg7: memref<128x64xf32, #tpu.memory_space<vmem>>, %arg8: memref<128x4xf32, #tpu.memory_space<vmem>>, %arg9: memref<128x4xf32, #tpu.memory_space<vmem>>) attributes {dimension_semantics = [#tpu.dimension_semantics<parallel>], iteration_bounds = array<i64: 1>, scalar_prefetch = 0 : i64, scratch_operands = 0 : i64, tpu.core_type = #tpu.core_type<tc>, window_params = [{transform_indices = @transform_0, window_bounds = array<i64: 128, 32>}, {pipeline_mode = #tpu.pipeline_mode<synchronous>, transform_indices = @transform_1, window_bounds = array<i64: 32, 64>}, {pipeline_mode = #tpu.pipeline_mode<synchronous>, transform_indices = @transform_2, window_bounds = array<i64: 32, 64>}, {pipeline_mode = #tpu.pipeline_mode<synchronous>, transform_indices = @transform_3, window_bounds = array<i64: 64, 4>}, {pipeline_mode = #tpu.pipeline_mode<synchronous>, transform_indices = @transform_4, window_bounds = array<i64: 64, 4>}, {transform_indices = @transform_5, window_bounds = array<i64: 128, 64>}, {transform_indices = @transform_6, window_bounds = array<i64: 128, 64>}, {transform_indices = @transform_7, window_bounds = array<i64: 128, 4>}, {transform_indices = @transform_8, window_bounds = array<i64: 128, 4>}]} {
    %c0 = arith.constant 0 : index
    %c0_0 = arith.constant 0 : index
    %0 = vector.load %arg1[%c0, %c0_0] : memref<128x32xf32, #tpu.memory_space<vmem>>, vector<128x32xf32>
    %1 = arith.truncf %0 : vector<128x32xf32> to vector<128x32xbf16>
    %c0_1 = arith.constant 0 : index
    %c0_2 = arith.constant 0 : index
    %2 = vector.load %arg2[%c0_1, %c0_2] : memref<32x64xbf16, #tpu.memory_space<vmem>>, vector<32x64xbf16>
    %cst = arith.constant dense<0.000000e+00> : vector<128x64xf32>
    %3 = tpu.matmul %1, %2, %cst {dimension_numbers = #tpu.dot_dimension_numbers<[1], [0], [0], [1], [0, 0, 1, 1], [], []>} : vector<128x32xbf16>, vector<32x64xbf16>, vector<128x64xf32> -> vector<128x64xf32>
    %4 = arith.truncf %3 : vector<128x64xf32> to vector<128x64xbf16>
    %c0_3 = arith.constant 0 : index
    %c0_4 = arith.constant 0 : index
    %5 = vector.load %arg6[%c0_3, %c0_4] : memref<128x64xbf16, #tpu.memory_space<vmem>>, vector<128x64xbf16>
    tpu.vector_store %arg6[%c0_3, %c0_4], %4 {strides = array<i32>} : memref<128x64xbf16, #tpu.memory_space<vmem>>, vector<128x64xbf16>,
    %c0_5 = arith.constant 0 : index
    %c0_6 = arith.constant 0 : index
    %6 = vector.load %arg3[%c0_5, %c0_6] : memref<32x64xbf16, #tpu.memory_space<vmem>>, vector<32x64xbf16>
    %cst_7 = arith.constant dense<0.000000e+00> : vector<128x64xf32>
    %7 = tpu.matmul %1, %6, %cst_7 {dimension_numbers = #tpu.dot_dimension_numbers<[1], [0], [0], [1], [0, 0, 1, 1], [], []>} : vector<128x32xbf16>, vector<32x64xbf16>, vector<128x64xf32> -> vector<128x64xf32>
    %c0_8 = arith.constant 0 : index
    %c0_9 = arith.constant 0 : index
    %8 = vector.load %arg7[%c0_8, %c0_9] : memref<128x64xf32, #tpu.memory_space<vmem>>, vector<128x64xf32>
    tpu.vector_store %arg7[%c0_8, %c0_9], %7 {strides = array<i32>} : memref<128x64xf32, #tpu.memory_space<vmem>>, vector<128x64xf32>,
    %c0_10 = arith.constant 0 : index
    %c0_11 = arith.constant 0 : index
    %9 = vector.load %arg4[%c0_10, %c0_11] : memref<64x4xbf16, #tpu.memory_space<vmem>>, vector<64x4xbf16>
    %cst_12 = arith.constant dense<0.000000e+00> : vector<128x4xf32>
    %10 = tpu.matmul %4, %9, %cst_12 {dimension_numbers = #tpu.dot_dimension_numbers<[1], [0], [0], [1], [0, 0, 1, 1], [], []>} : vector<128x64xbf16>, vector<64x4xbf16>, vector<128x4xf32> -> vector<128x4xf32>
    %c0_13 = arith.constant 0 : index
    %c0_14 = arith.constant 0 : index
    %11 = vector.load %arg8[%c0_13, %c0_14] : memref<128x4xf32, #tpu.memory_space<vmem>>, vector<128x4xf32>
    tpu.vector_store %arg8[%c0_13, %c0_14], %10 {strides = array<i32>} : memref<128x4xf32, #tpu.memory_space<vmem>>, vector<128x4xf32>,
    %c0_15 = arith.constant 0 : index
    %c0_16 = arith.constant 0 : index
    %12 = vector.load %arg5[%c0_15, %c0_16] : memref<64x4xbf16, #tpu.memory_space<vmem>>, vector<64x4xbf16>
    %cst_17 = arith.constant dense<0.000000e+00> : vector<128x4xf32>
    %13 = tpu.matmul %4, %12, %cst_17 {dimension_numbers = #tpu.dot_dimension_numbers<[1], [0], [0], [1], [0, 0, 1, 1], [], []>} : vector<128x64xbf16>, vector<64x4xbf16>, vector<128x4xf32> -> vector<128x4xf32>
    %c0_18 = arith.constant 0 : index
    %c0_19 = arith.constant 0 : index
    %14 = vector.load %arg9[%c0_18, %c0_19] : memref<128x4xf32, #tpu.memory_space<vmem>>, vector<128x4xf32>
    tpu.vector_store %arg9[%c0_18, %c0_19], %13 {strides = array<i32>} : memref<128x4xf32, #tpu.memory_space<vmem>>, vector<128x4xf32>,
    return
  }
  func.func @transform_0(%arg0: i32) -> (i32, i32) {
    %c0_i32 = arith.constant 0 : i32
    %c0_i32_0 = arith.constant 0 : i32
    return %arg0, %c0_i32 : i32, i32
  }
  func.func @transform_1(%arg0: i32) -> (i32, i32) {
    %c0_i32 = arith.constant 0 : i32
    %c0_i32_0 = arith.constant 0 : i32
    %c0_i32_1 = arith.constant 0 : i32
    return %c0_i32, %c0_i32_0 : i32, i32
  }
  func.func @transform_2(%arg0: i32) -> (i32, i32) {
    %c0_i32 = arith.constant 0 : i32
    %c0_i32_0 = arith.constant 0 : i32
    %c0_i32_1 = arith.constant 0 : i32
    return %c0_i32, %c0_i32_0 : i32, i32
  }
  func.func @transform_3(%arg0: i32) -> (i32, i32) {
    %c0_i32 = arith.constant 0 : i32
    %c0_i32_0 = arith.constant 0 : i32
    %c0_i32_1 = arith.constant 0 : i32
    return %c0_i32, %c0_i32_0 : i32, i32
  }
  func.func @transform_4(%arg0: i32) -> (i32, i32) {
    %c0_i32 = arith.constant 0 : i32
    %c0_i32_0 = arith.constant 0 : i32
    %c0_i32_1 = arith.constant 0 : i32
    return %c0_i32, %c0_i32_0 : i32, i32
  }
  func.func @transform_5(%arg0: i32) -> (i32, i32) {
    %c0_i32 = arith.constant 0 : i32
    %c0_i32_0 = arith.constant 0 : i32
    return %arg0, %c0_i32 : i32, i32
  }
  func.func @transform_6(%arg0: i32) -> (i32, i32) {
    %c0_i32 = arith.constant 0 : i32
    %c0_i32_0 = arith.constant 0 : i32
    return %arg0, %c0_i32 : i32, i32
  }
  func.func @transform_7(%arg0: i32) -> (i32, i32) {
    %c0_i32 = arith.constant 0 : i32
    %c0_i32_0 = arith.constant 0 : i32
    return %arg0, %c0_i32 : i32, i32
  }
  func.func @transform_8(%arg0: i32) -> (i32, i32) {
    %c0_i32 = arith.constant 0 : i32
    %c0_i32_0 = arith.constant 0 : i32
    return %arg0, %c0_i32 : i32, i32
  }
}

</mosaic_0001>

<llo_original>
// kernel: tpu_custom_call.1
$region0: #{tpu_custom_call.1}
  #allocation0 [shape = 'u32[]', space=smem, size = 0x4, offset = 0x4, fixed_abs, tag = 'smem constant byte address 0x4 - core index']
  #allocation1 [shape = 'u32[72,128]{1,0:T(1,128)}', space=vmem, size = 0x9000, scoped, tag = 'internal scratch']
  %s0 = inlined_call_operand.vmem [shape: f32[128,32], index: 0, kind: input, shape index: {}]
  %s1 = inlined_call_operand.vmem [shape: bf16[32,64], index: 1, kind: input, shape index: {}]
  %s2 = inlined_call_operand.vmem [shape: bf16[32,64], index: 2, kind: input, shape index: {}]
  %s3 = inlined_call_operand.vmem [shape: bf16[64,4], index: 3, kind: input, shape index: {}]
  %s4 = inlined_call_operand.vmem [shape: bf16[64,4], index: 4, kind: input, shape index: {}]
  %s5 = inlined_call_operand.vmem [shape: bf16[128,64], index: 5, kind: output, shape index: {0}]
  %s6 = inlined_call_operand.vmem [shape: f32[128,64], index: 6, kind: output, shape index: {1}]
  %s7 = inlined_call_operand.vmem [shape: f32[128,4], index: 7, kind: output, shape index: {2}]
  %s8 = inlined_call_operand.vmem [shape: f32[128,4], index: 8, kind: output, shape index: {3}]
  %9 = xla_tuple %s5, %s6, %s7, %s8
  %s10 = sld [smem:[#allocation0]]
  $region54: #{tpu_custom_call.1} parent=0
    _
  %s12 = ssub.s32 1, %s10
  %s13 = scalar_select 0, %s12, %s10
  // Predicated region
  $region2: #{tpu_custom_call.1} parent=0 // pred_check
    _
  $region3: #{tpu_custom_call.1} parent=0 // pred_check_branch
    %15 = sbr.rel (0) target = $region5
  $region4: #{tpu_custom_call.1} parent=0 // pred_region
    _
  $region5: #{tpu_custom_call.1} parent=0 // pred_fallthru
    _
  // Predicated region
  $region6: #{tpu_custom_call.1} parent=0 // pred_check
    _
  $region7: #{tpu_custom_call.1} parent=0 // pred_check_branch
    %17 = sbr.rel (0) target = $region9
  $region8: #{tpu_custom_call.1} parent=0 // pred_region
    _
  $region9: #{tpu_custom_call.1} parent=0 // pred_fallthru
    _
  // Predicated region
  $region10: #{tpu_custom_call.1} parent=0 // pred_check
    _
  $region11: #{tpu_custom_call.1} parent=0 // pred_check_branch
    %19 = sbr.rel (0) target = $region13
  $region12: #{tpu_custom_call.1} parent=0 // pred_region
    _
  $region13: #{tpu_custom_call.1} parent=0 // pred_fallthru
    _
  // Predicated region
  $region14: #{tpu_custom_call.1} parent=0 // pred_check
    _
  $region15: #{tpu_custom_call.1} parent=0 // pred_check_branch
    %21 = sbr.rel (0) target = $region17
  $region16: #{tpu_custom_call.1} parent=0 // pred_region
    _
  $region17: #{tpu_custom_call.1} parent=0 // pred_fallthru
    _
  // Predicated region
  $region18: #{tpu_custom_call.1} parent=0 // pred_check
    _
  $region19: #{tpu_custom_call.1} parent=0 // pred_check_branch
    %23 = sbr.rel (0) target = $region21
  $region20: #{tpu_custom_call.1} parent=0 // pred_region
    _
  $region21: #{tpu_custom_call.1} parent=0 // pred_fallthru
    _
  %v25 = vld [vmem:[%s0] sm:$0xff]
  %v26 = vld [vmem:[%s0 + $0x8] sm:$0xff]
  %v27 = vld [vmem:[%s0 + $0x10] sm:$0xff]
  %v28 = vld [vmem:[%s0 + $0x18] sm:$0xff]
  %v29 = vld [vmem:[%s0 + $0x20] sm:$0xff]
  %v30 = vld [vmem:[%s0 + $0x28] sm:$0xff]
  %v31 = vld [vmem:[%s0 + $0x30] sm:$0xff]
  %v32 = vld [vmem:[%s0 + $0x38] sm:$0xff]
  %v33 = vld [vmem:[%s0 + $0x40] sm:$0xff]
  %v34 = vld [vmem:[%s0 + $0x48] sm:$0xff]
  %v35 = vld [vmem:[%s0 + $0x50] sm:$0xff]
  %v36 = vld [vmem:[%s0 + $0x58] sm:$0xff]
  %v37 = vld [vmem:[%s0 + $0x60] sm:$0xff]
  %v38 = vld [vmem:[%s0 + $0x68] sm:$0xff]
  %v39 = vld [vmem:[%s0 + $0x70] sm:$0xff]
  %v40 = vld [vmem:[%s0 + $0x78] sm:$0xff]
  %v41 = vpack.c.bf16 %v26, %v25
  %v42 = vpack.c.bf16 %v28, %v27
  %v43 = vpack.c.bf16 %v30, %v29
  %v44 = vpack.c.bf16 %v32, %v31
  %v45 = vpack.c.bf16 %v34, %v33
  %v46 = vpack.c.bf16 %v36, %v35
  %v47 = vpack.c.bf16 %v38, %v37
  %v48 = vpack.c.bf16 %v40, %v39
  %v49 = vld [vmem:[%s1] sm:$0xf]
  %v50 = vld [vmem:[%s1 + $0x4] sm:$0xf]
  %v51 = vld [vmem:[%s1 + $0x8] sm:$0xf]
  %v52 = vld [vmem:[%s1 + $0xc] sm:$0xf]
  %v57 = vunpack.c.l.b16 %v49
  %v58 = vunpack.c.l.b16 %v50
  %v59 = vunpack.c.l.b16 %v51
  %v60 = vunpack.c.l.b16 %v52
  %v61 = vpack.c.b16 %v58, %v57
  %v62 = vpack.c.b16 %v60, %v59
  %vm65 = vcmask 261120
  %v67 = vsel %vm65, %v41, 0
  %v70 = vsel %vm65, %v42, 0
  %v73 = vsel %vm65, %v43, 0
  %v76 = vsel %vm65, %v44, 0
  %v79 = vsel %vm65, %v45, 0
  %v82 = vsel %vm65, %v46, 0
  %v85 = vsel %vm65, %v47, 0
  %v88 = vsel %vm65, %v48, 0
  %90 = vmatpush.bf16.msra.mxu0 0
  %91 = vmatpush.bf16.msra.mxu0 0
  %92 = vmatpush.bf16.msra.mxu0 0
  %93 = vmatpush.bf16.msra.mxu0 0
  %94 = vmatpush.bf16.msra.mxu0 0
  %95 = vmatpush.bf16.msra.mxu0 0
  %96 = vmatpush.bf16.msra.mxu0 %v62
  %97 = vmatpush.bf16.msra.mxu0 %v61
  %98 = vmatmul.bf16.gmra.mxu0 %v67
  %v99 = vpop.f32.mrf.mxu0
  %v100 = vadd.f32 0.0, %v99
  %v101 = vpop.f32.mrf.mxu0
  %v102 = vadd.f32 0.0, %v101
  %103 = vmatmul.bf16.gmra.mxu0 %v70
  %v104 = vpop.f32.mrf.mxu0
  %v105 = vadd.f32 0.0, %v104
  %v106 = vpop.f32.mrf.mxu0
  %v107 = vadd.f32 0.0, %v106
  %108 = vmatmul.bf16.gmra.mxu0 %v73
  %v109 = vpop.f32.mrf.mxu0
  %v110 = vadd.f32 0.0, %v109
  %v111 = vpop.f32.mrf.mxu0
  %v112 = vadd.f32 0.0, %v111
  %113 = vmatmul.bf16.gmra.mxu0 %v76
  %v114 = vpop.f32.mrf.mxu0
  %v115 = vadd.f32 0.0, %v114
  %v116 = vpop.f32.mrf.mxu0
  %v117 = vadd.f32 0.0, %v116
  %118 = vmatmul.bf16.gmra.mxu0 %v79
  %v119 = vpop.f32.mrf.mxu0
  %v120 = vadd.f32 0.0, %v119
  %v121 = vpop.f32.mrf.mxu0
  %v122 = vadd.f32 0.0, %v121
  %123 = vmatmul.bf16.gmra.mxu0 %v82
  %v124 = vpop.f32.mrf.mxu0
  %v125 = vadd.f32 0.0, %v124
  %v126 = vpop.f32.mrf.mxu0
  %v127 = vadd.f32 0.0, %v126
  %128 = vmatmul.bf16.gmra.mxu0 %v85
  %v129 = vpop.f32.mrf.mxu0
  %v130 = vadd.f32 0.0, %v129
  %v131 = vpop.f32.mrf.mxu0
  %v132 = vadd.f32 0.0, %v131
  %133 = vmatmul.bf16.gmra.mxu0 %v88
  %v134 = vpop.f32.mrf.mxu0
  %v135 = vadd.f32 0.0, %v134
  %v136 = vpop.f32.mrf.mxu0
  %v137 = vadd.f32 0.0, %v136
  %138 = vdwg.mxu0
  %v139 = vpack.c.bf16 %v100, %v100
  %v140 = vpack.c.bf16 %v102, %v102
  %v141 = vpack.c.bf16 %v105, %v105
  %v142 = vpack.c.bf16 %v107, %v107
  %v143 = vpack.c.bf16 %v110, %v110
  %v144 = vpack.c.bf16 %v112, %v112
  %v145 = vpack.c.bf16 %v115, %v115
  %v146 = vpack.c.bf16 %v117, %v117
  %v147 = vpack.c.bf16 %v120, %v120
  %v148 = vpack.c.bf16 %v122, %v122
  %v149 = vpack.c.bf16 %v125, %v125
  %v150 = vpack.c.bf16 %v127, %v127
  %v151 = vpack.c.bf16 %v130, %v130
  %v152 = vpack.c.bf16 %v132, %v132
  %v153 = vpack.c.bf16 %v135, %v135
  %v154 = vpack.c.bf16 %v137, %v137
  %vm155 = vcmask 519168
  %156 = vst.msk [vmem:[%s5] sm:$0xf] %vm155, %v139
  %157 = vst.msk [vmem:[%s5 + $0x4] sm:$0xf] %vm155, %v140
  %158 = vst.msk [vmem:[%s5 + $0x8] sm:$0xf] %vm155, %v141
  %159 = vst.msk [vmem:[%s5 + $0xc] sm:$0xf] %vm155, %v142
  %160 = vst.msk [vmem:[%s5 + $0x10] sm:$0xf] %vm155, %v143
  %161 = vst.msk [vmem:[%s5 + $0x14] sm:$0xf] %vm155, %v144
  %162 = vst.msk [vmem:[%s5 + $0x18] sm:$0xf] %vm155, %v145
  %163 = vst.msk [vmem:[%s5 + $0x1c] sm:$0xf] %vm155, %v146
  %164 = vst.msk [vmem:[%s5 + $0x20] sm:$0xf] %vm155, %v147
  %165 = vst.msk [vmem:[%s5 + $0x24] sm:$0xf] %vm155, %v148
  %166 = vst.msk [vmem:[%s5 + $0x28] sm:$0xf] %vm155, %v149
  %167 = vst.msk [vmem:[%s5 + $0x2c] sm:$0xf] %vm155, %v150
  %168 = vst.msk [vmem:[%s5 + $0x30] sm:$0xf] %vm155, %v151
  %169 = vst.msk [vmem:[%s5 + $0x34] sm:$0xf] %vm155, %v152
  %170 = vst.msk [vmem:[%s5 + $0x38] sm:$0xf] %vm155, %v153
  %171 = vst.msk [vmem:[%s5 + $0x3c] sm:$0xf] %vm155, %v154
  %v172 = vld [vmem:[%s2] sm:$0xf]
  %v173 = vld [vmem:[%s2 + $0x4] sm:$0xf]
  %v174 = vld [vmem:[%s2 + $0x8] sm:$0xf]
  %v175 = vld [vmem:[%s2 + $0xc] sm:$0xf]
  %v180 = vunpack.c.l.b16 %v172
  %v181 = vunpack.c.l.b16 %v173
  %v182 = vunpack.c.l.b16 %v174
  %v183 = vunpack.c.l.b16 %v175
  %v184 = vpack.c.b16 %v181, %v180
  %v185 = vpack.c.b16 %v183, %v182
  %188 = vmatpush.bf16.msra.mxu0 0
  %189 = vmatpush.bf16.msra.mxu0 0
  %190 = vmatpush.bf16.msra.mxu0 0
  %191 = vmatpush.bf16.msra.mxu0 0
  %192 = vmatpush.bf16.msra.mxu0 0
  %193 = vmatpush.bf16.msra.mxu0 0
  %194 = vmatpush.bf16.msra.mxu0 %v185
  %195 = vmatpush.bf16.msra.mxu0 %v184
  %196 = vmatmul.bf16.gmra.mxu0 %v67
  %v197 = vpop.f32.mrf.mxu0
  %v198 = vadd.f32 0.0, %v197
  %v199 = vpop.f32.mrf.mxu0
  %v200 = vadd.f32 0.0, %v199
  %201 = vmatmul.bf16.gmra.mxu0 %v70
  %v202 = vpop.f32.mrf.mxu0
  %v203 = vadd.f32 0.0, %v202
  %v204 = vpop.f32.mrf.mxu0
  %v205 = vadd.f32 0.0, %v204
  %206 = vmatmul.bf16.gmra.mxu0 %v73
  %v207 = vpop.f32.mrf.mxu0
  %v208 = vadd.f32 0.0, %v207
  %v209 = vpop.f32.mrf.mxu0
  %v210 = vadd.f32 0.0, %v209
  %211 = vmatmul.bf16.gmra.mxu0 %v76
  %v212 = vpop.f32.mrf.mxu0
  %v213 = vadd.f32 0.0, %v212
  %v214 = vpop.f32.mrf.mxu0
  %v215 = vadd.f32 0.0, %v214
  %216 = vmatmul.bf16.gmra.mxu0 %v79
  %v217 = vpop.f32.mrf.mxu0
  %v218 = vadd.f32 0.0, %v217
  %v219 = vpop.f32.mrf.mxu0
  %v220 = vadd.f32 0.0, %v219
  %221 = vmatmul.bf16.gmra.mxu0 %v82
  %v222 = vpop.f32.mrf.mxu0
  %v223 = vadd.f32 0.0, %v222
  %v224 = vpop.f32.mrf.mxu0
  %v225 = vadd.f32 0.0, %v224
  %226 = vmatmul.bf16.gmra.mxu0 %v85
  %v227 = vpop.f32.mrf.mxu0
  %v228 = vadd.f32 0.0, %v227
  %v229 = vpop.f32.mrf.mxu0
  %v230 = vadd.f32 0.0, %v229
  %231 = vmatmul.bf16.gmra.mxu0 %v88
  %v232 = vpop.f32.mrf.mxu0
  %v233 = vadd.f32 0.0, %v232
  %v234 = vpop.f32.mrf.mxu0
  %v235 = vadd.f32 0.0, %v234
  %236 = vdwg.mxu0
  %vm237 = vcmask 523264
  %238 = vst.msk [vmem:[%s6] sm:$0xff] %vm237, %v198
  %239 = vst.msk [vmem:[%s6 + $0x8] sm:$0xff] %vm237, %v200
  %240 = vst.msk [vmem:[%s6 + $0x10] sm:$0xff] %vm237, %v203
  %241 = vst.msk [vmem:[%s6 + $0x18] sm:$0xff] %vm237, %v205
  %242 = vst.msk [vmem:[%s6 + $0x20] sm:$0xff] %vm237, %v208
  %243 = vst.msk [vmem:[%s6 + $0x28] sm:$0xff] %vm237, %v210
  %244 = vst.msk [vmem:[%s6 + $0x30] sm:$0xff] %vm237, %v213
  %245 = vst.msk [vmem:[%s6 + $0x38] sm:$0xff] %vm237, %v215
  %246 = vst.msk [vmem:[%s6 + $0x40] sm:$0xff] %vm237, %v218
  %247 = vst.msk [vmem:[%s6 + $0x48] sm:$0xff] %vm237, %v220
  %248 = vst.msk [vmem:[%s6 + $0x50] sm:$0xff] %vm237, %v223
  %249 = vst.msk [vmem:[%s6 + $0x58] sm:$0xff] %vm237, %v225
  %250 = vst.msk [vmem:[%s6 + $0x60] sm:$0xff] %vm237, %v228
  %251 = vst.msk [vmem:[%s6 + $0x68] sm:$0xff] %vm237, %v230
  %252 = vst.msk [vmem:[%s6 + $0x70] sm:$0xff] %vm237, %v233
  %253 = vst.msk [vmem:[%s6 + $0x78] sm:$0xff] %vm237, %v235
  %v254 = vld [vmem:[%s3] sm:$0xf]
  %v255 = vld [vmem:[%s3 + $0x4] sm:$0xf]
  %v256 = vld [vmem:[%s3 + $0x8] sm:$0xf]
  %v257 = vld [vmem:[%s3 + $0xc] sm:$0xf]
  %v258 = vld [vmem:[%s3 + $0x10] sm:$0xf]
  %v259 = vld [vmem:[%s3 + $0x14] sm:$0xf]
  %v260 = vld [vmem:[%s3 + $0x18] sm:$0xf]
  %v261 = vld [vmem:[%s3 + $0x1c] sm:$0xf]
  %v278 = vunpack.c.l.b16 %v139
  %v279 = vunpack.c.l.b16 %v140
  %v280 = vunpack.c.l.b16 %v141
  %v281 = vunpack.c.l.b16 %v142
  %v282 = vunpack.c.l.b16 %v143
  %v283 = vunpack.c.l.b16 %v144
  %v284 = vunpack.c.l.b16 %v145
  %v285 = vunpack.c.l.b16 %v146
  %v286 = vunpack.c.l.b16 %v147
  %v287 = vunpack.c.l.b16 %v148
  %v288 = vunpack.c.l.b16 %v149
  %v289 = vunpack.c.l.b16 %v150
  %v290 = vunpack.c.l.b16 %v151
  %v291 = vunpack.c.l.b16 %v152
  %v292 = vunpack.c.l.b16 %v153
  %v293 = vunpack.c.l.b16 %v154
  %v294 = vpack.c.b16 %v279, %v278
  %v295 = vpack.c.b16 %v281, %v280
  %v296 = vpack.c.b16 %v283, %v282
  %v297 = vpack.c.b16 %v285, %v284
  %v298 = vpack.c.b16 %v287, %v286
  %v299 = vpack.c.b16 %v289, %v288
  %v300 = vpack.c.b16 %v291, %v290
  %v301 = vpack.c.b16 %v293, %v292
  %v310 = vunpack.c.l.b16 %v254
  %v311 = vunpack.c.l.b16 %v255
  %v312 = vunpack.c.l.b16 %v256
  %v313 = vunpack.c.l.b16 %v257
  %v314 = vunpack.c.l.b16 %v258
  %v315 = vunpack.c.l.b16 %v259
  %v316 = vunpack.c.l.b16 %v260
  %v317 = vunpack.c.l.b16 %v261
  %v318 = vpack.c.b16 %v311, %v310
  %v319 = vpack.c.b16 %v313, %v312
  %v320 = vpack.c.b16 %v315, %v314
  %v321 = vpack.c.b16 %v317, %v316
  %v327 = vsel %vm237, %v294, 0
  %v330 = vsel %vm237, %v295, 0
  %v333 = vsel %vm237, %v296, 0
  %v336 = vsel %vm237, %v297, 0
  %v339 = vsel %vm237, %v298, 0
  %v342 = vsel %vm237, %v299, 0
  %v345 = vsel %vm237, %v300, 0
  %v348 = vsel %vm237, %v301, 0
  %350 = vmatpush.bf16.msra.mxu0 0
  %351 = vmatpush.bf16.msra.mxu0 0
  %352 = vmatpush.bf16.msra.mxu0 0
  %353 = vmatpush.bf16.msra.mxu0 0
  %354 = vmatpush.bf16.msra.mxu0 %v321
  %355 = vmatpush.bf16.msra.mxu0 %v320
  %356 = vmatpush.bf16.msra.mxu0 %v319
  %357 = vmatpush.bf16.msra.mxu0 %v318
  %358 = vmatmul.bf16.gmra.mxu0 %v327
  %v359 = vpop.f32.mrf.mxu0
  %v360 = vadd.f32 0.0, %v359
  %v361 = vpop.f32.mrf.mxu0
  %v362 = vadd.f32 0.0, %v361
  %363 = vmatmul.bf16.gmra.mxu0 %v330
  %v364 = vpop.f32.mrf.mxu0
  %v365 = vadd.f32 0.0, %v364
  %v366 = vpop.f32.mrf.mxu0
  %v367 = vadd.f32 0.0, %v366
  %368 = vmatmul.bf16.gmra.mxu0 %v333
  %v369 = vpop.f32.mrf.mxu0
  %v370 = vadd.f32 0.0, %v369
  %v371 = vpop.f32.mrf.mxu0
  %v372 = vadd.f32 0.0, %v371
  %373 = vmatmul.bf16.gmra.mxu0 %v336
  %v374 = vpop.f32.mrf.mxu0
  %v375 = vadd.f32 0.0, %v374
  %v376 = vpop.f32.mrf.mxu0
  %v377 = vadd.f32 0.0, %v376
  %378 = vmatmul.bf16.gmra.mxu0 %v339
  %v379 = vpop.f32.mrf.mxu0
  %v380 = vadd.f32 0.0, %v379
  %v381 = vpop.f32.mrf.mxu0
  %v382 = vadd.f32 0.0, %v381
  %383 = vmatmul.bf16.gmra.mxu0 %v342
  %v384 = vpop.f32.mrf.mxu0
  %v385 = vadd.f32 0.0, %v384
  %v386 = vpop.f32.mrf.mxu0
  %v387 = vadd.f32 0.0, %v386
  %388 = vmatmul.bf16.gmra.mxu0 %v345
  %v389 = vpop.f32.mrf.mxu0
  %v390 = vadd.f32 0.0, %v389
  %v391 = vpop.f32.mrf.mxu0
  %v392 = vadd.f32 0.0, %v391
  %393 = vmatmul.bf16.gmra.mxu0 %v348
  %v394 = vpop.f32.mrf.mxu0
  %v395 = vadd.f32 0.0, %v394
  %v396 = vpop.f32.mrf.mxu0
  %v397 = vadd.f32 0.0, %v396
  %398 = vdwg.mxu0
  %vm399 = vcmask 31744
  %400 = vst.msk [vmem:[%s7] sm:$0xff] %vm399, %v360
  %401 = vst.msk [vmem:[%s7 + $0x8] sm:$0xff] %vm399, %v362
  %402 = vst.msk [vmem:[%s7 + $0x10] sm:$0xff] %vm399, %v365
  %403 = vst.msk [vmem:[%s7 + $0x18] sm:$0xff] %vm399, %v367
  %404 = vst.msk [vmem:[%s7 + $0x20] sm:$0xff] %vm399, %v370
  %405 = vst.msk [vmem:[%s7 + $0x28] sm:$0xff] %vm399, %v372
  %406 = vst.msk [vmem:[%s7 + $0x30] sm:$0xff] %vm399, %v375
  %407 = vst.msk [vmem:[%s7 + $0x38] sm:$0xff] %vm399, %v377
  %408 = vst.msk [vmem:[%s7 + $0x40] sm:$0xff] %vm399, %v380
  %409 = vst.msk [vmem:[%s7 + $0x48] sm:$0xff] %vm399, %v382
  %410 = vst.msk [vmem:[%s7 + $0x50] sm:$0xff] %vm399, %v385
  %411 = vst.msk [vmem:[%s7 + $0x58] sm:$0xff] %vm399, %v387
  %412 = vst.msk [vmem:[%s7 + $0x60] sm:$0xff] %vm399, %v390
  %413 = vst.msk [vmem:[%s7 + $0x68] sm:$0xff] %vm399, %v392
  %414 = vst.msk [vmem:[%s7 + $0x70] sm:$0xff] %vm399, %v395
  %415 = vst.msk [vmem:[%s7 + $0x78] sm:$0xff] %vm399, %v397
  %v416 = vld [vmem:[%s4] sm:$0xf]
  %v417 = vld [vmem:[%s4 + $0x4] sm:$0xf]
  %v418 = vld [vmem:[%s4 + $0x8] sm:$0xf]
  %v419 = vld [vmem:[%s4 + $0xc] sm:$0xf]
  %v420 = vld [vmem:[%s4 + $0x10] sm:$0xf]
  %v421 = vld [vmem:[%s4 + $0x14] sm:$0xf]
  %v422 = vld [vmem:[%s4 + $0x18] sm:$0xf]
  %v423 = vld [vmem:[%s4 + $0x1c] sm:$0xf]
  %v432 = vunpack.c.l.b16 %v416
  %v433 = vunpack.c.l.b16 %v417
  %v434 = vunpack.c.l.b16 %v418
  %v435 = vunpack.c.l.b16 %v419
  %v436 = vunpack.c.l.b16 %v420
  %v437 = vunpack.c.l.b16 %v421
  %v438 = vunpack.c.l.b16 %v422
  %v439 = vunpack.c.l.b16 %v423
  %v440 = vpack.c.b16 %v433, %v432
  %v441 = vpack.c.b16 %v435, %v434
  %v442 = vpack.c.b16 %v437, %v436
  %v443 = vpack.c.b16 %v439, %v438
  %448 = vmatpush.bf16.msra.mxu0 0
  %449 = vmatpush.bf16.msra.mxu0 0
  %450 = vmatpush.bf16.msra.mxu0 0
  %451 = vmatpush.bf16.msra.mxu0 0
  %452 = vmatpush.bf16.msra.mxu0 %v443
  %453 = vmatpush.bf16.msra.mxu0 %v442
  %454 = vmatpush.bf16.msra.mxu0 %v441
  %455 = vmatpush.bf16.msra.mxu0 %v440
  %456 = vmatmul.bf16.gmra.mxu0 %v327
  %v457 = vpop.f32.mrf.mxu0
  %v458 = vadd.f32 0.0, %v457
  %v459 = vpop.f32.mrf.mxu0
  %v460 = vadd.f32 0.0, %v459
  %461 = vmatmul.bf16.gmra.mxu0 %v330
  %v462 = vpop.f32.mrf.mxu0
  %v463 = vadd.f32 0.0, %v462
  %v464 = vpop.f32.mrf.mxu0
  %v465 = vadd.f32 0.0, %v464
  %466 = vmatmul.bf16.gmra.mxu0 %v333
  %v467 = vpop.f32.mrf.mxu0
  %v468 = vadd.f32 0.0, %v467
  %v469 = vpop.f32.mrf.mxu0
  %v470 = vadd.f32 0.0, %v469
  %471 = vmatmul.bf16.gmra.mxu0 %v336
  %v472 = vpop.f32.mrf.mxu0
  %v473 = vadd.f32 0.0, %v472
  %v474 = vpop.f32.mrf.mxu0
  %v475 = vadd.f32 0.0, %v474
  %476 = vmatmul.bf16.gmra.mxu0 %v339
  %v477 = vpop.f32.mrf.mxu0
  %v478 = vadd.f32 0.0, %v477
  %v479 = vpop.f32.mrf.mxu0
  %v480 = vadd.f32 0.0, %v479
  %481 = vmatmul.bf16.gmra.mxu0 %v342
  %v482 = vpop.f32.mrf.mxu0
  %v483 = vadd.f32 0.0, %v482
  %v484 = vpop.f32.mrf.mxu0
  %v485 = vadd.f32 0.0, %v484
  %486 = vmatmul.bf16.gmra.mxu0 %v345
  %v487 = vpop.f32.mrf.mxu0
  %v488 = vadd.f32 0.0, %v487
  %v489 = vpop.f32.mrf.mxu0
  %v490 = vadd.f32 0.0, %v489
  %491 = vmatmul.bf16.gmra.mxu0 %v348
  %v492 = vpop.f32.mrf.mxu0
  %v493 = vadd.f32 0.0, %v492
  %v494 = vpop.f32.mrf.mxu0
  %v495 = vadd.f32 0.0, %v494
  %496 = vdwg.mxu0
  %497 = vst.msk [vmem:[%s8] sm:$0xff] %vm399, %v458
  %498 = vst.msk [vmem:[%s8 + $0x8] sm:$0xff] %vm399, %v460
  %499 = vst.msk [vmem:[%s8 + $0x10] sm:$0xff] %vm399, %v463
  %500 = vst.msk [vmem:[%s8 + $0x18] sm:$0xff] %vm399, %v465
  %501 = vst.msk [vmem:[%s8 + $0x20] sm:$0xff] %vm399, %v468
  %502 = vst.msk [vmem:[%s8 + $0x28] sm:$0xff] %vm399, %v470
  %503 = vst.msk [vmem:[%s8 + $0x30] sm:$0xff] %vm399, %v473
  %504 = vst.msk [vmem:[%s8 + $0x38] sm:$0xff] %vm399, %v475
  %505 = vst.msk [vmem:[%s8 + $0x40] sm:$0xff] %vm399, %v478
  %506 = vst.msk [vmem:[%s8 + $0x48] sm:$0xff] %vm399, %v480
  %507 = vst.msk [vmem:[%s8 + $0x50] sm:$0xff] %vm399, %v483
  %508 = vst.msk [vmem:[%s8 + $0x58] sm:$0xff] %vm399, %v485
  %509 = vst.msk [vmem:[%s8 + $0x60] sm:$0xff] %vm399, %v488
  %510 = vst.msk [vmem:[%s8 + $0x68] sm:$0xff] %vm399, %v490
  %511 = vst.msk [vmem:[%s8 + $0x70] sm:$0xff] %vm399, %v493
  %512 = vst.msk [vmem:[%s8 + $0x78] sm:$0xff] %vm399, %v495
  // Predicated region
  $region22: #{tpu_custom_call.1} parent=0 // pred_check
    _
  $region23: #{tpu_custom_call.1} parent=0 // pred_check_branch
    %514 = sbr.rel (0) target = $region25
  $region24: #{tpu_custom_call.1} parent=0 // pred_region
    _
  $region25: #{tpu_custom_call.1} parent=0 // pred_fallthru
    _
  // Predicated region
  $region26: #{tpu_custom_call.1} parent=0 // pred_check
    _
  $region27: #{tpu_custom_call.1} parent=0 // pred_check_branch
    %516 = sbr.rel (0) target = $region29
  $region28: #{tpu_custom_call.1} parent=0 // pred_region
    _
  $region29: #{tpu_custom_call.1} parent=0 // pred_fallthru
    _
  // Predicated region
  $region30: #{tpu_custom_call.1} parent=0 // pred_check
    _
  $region31: #{tpu_custom_call.1} parent=0 // pred_check_branch
    %518 = sbr.rel (0) target = $region33
  $region32: #{tpu_custom_call.1} parent=0 // pred_region
    _
  $region33: #{tpu_custom_call.1} parent=0 // pred_fallthru
    _
  // Predicated region
  $region34: #{tpu_custom_call.1} parent=0 // pred_check
    _
  $region35: #{tpu_custom_call.1} parent=0 // pred_check_branch
    %520 = sbr.rel (0) target = $region37
  $region36: #{tpu_custom_call.1} parent=0 // pred_region
    _
  $region37: #{tpu_custom_call.1} parent=0 // pred_fallthru
    _
  // Predicated region
  $region38: #{tpu_custom_call.1} parent=0 // pred_check
    _
  $region39: #{tpu_custom_call.1} parent=0 // pred_check_branch
    %522 = sbr.rel (0) target = $region41
  $region40: #{tpu_custom_call.1} parent=0 // pred_region
    _
  $region41: #{tpu_custom_call.1} parent=0 // pred_fallthru
    _
  // Predicated region
  $region42: #{tpu_custom_call.1} parent=0 // pred_check
    _
  $region43: #{tpu_custom_call.1} parent=0 // pred_check_branch
    %524 = sbr.rel (0) target = $region45
  $region44: #{tpu_custom_call.1} parent=0 // pred_region
    _
  $region45: #{tpu_custom_call.1} parent=0 // pred_fallthru
    _
  // Predicated region
  $region46: #{tpu_custom_call.1} parent=0 // pred_check
    _
  $region47: #{tpu_custom_call.1} parent=0 // pred_check_branch
    %526 = sbr.rel (0) target = $region49
  $region48: #{tpu_custom_call.1} parent=0 // pred_region
    _
  $region49: #{tpu_custom_call.1} parent=0 // pred_fallthru
    _
  // Predicated region
  $region50: #{tpu_custom_call.1} parent=0 // pred_check
    _
  $region51: #{tpu_custom_call.1} parent=0 // pred_check_branch
    %528 = sbr.rel (0) target = $region53
  $region52: #{tpu_custom_call.1} parent=0 // pred_region
    _
  $region53: #{tpu_custom_call.1} parent=0 // pred_fallthru
    _

</llo_original>
